<compile_context>
chip_gen: v7x
topology: tpu7x:2x2x1
jax: 0.10.0
libtpu: 0.0.40
codegen_flags: <defaults>
</compile_context>

<pallas_src>
import jax
import jax.numpy as jnp
from jax.experimental import pallas as pl
from jax.experimental.pallas import tpu as pltpu


_LANE = 128                 # lane (last-dim) tile
_SUBLANE_BF16 = 16          # bf16 packs 16 rows per sublane group
_MAX_TILE_B = 1024          # rows per grid step (budget-capped below)


def _round_up(x, m):
    return (x + m - 1) // m * m


def _vmem_capacity_bytes():
    """Physical per-core VMEM; conservative default if the query fails."""
    try:
        return int(pltpu.get_tpu_info().vmem_capacity_bytes)
    except Exception:
        return 64 * 1024 * 1024      # v7x per-TC size: safe on every generation


# ----------------------------------------------------------------------------
# One-time parameter preparation (hoisted out of the forward hot path)
# ----------------------------------------------------------------------------
def prepare_fc_net_params(params, compute_dtype=jnp.bfloat16):
    """Pad hidden widths to lane multiples and cast weights once.

    * Hidden feature dims are zero-padded to multiples of 128 (lane-dense
      intermediates, full MXU tiles).  The network input dim and the final
      output dim stay logical: the kernel uses the "block == full array dim"
      exemption there, so no padded copies of x / the output ever hit HBM.
    * Weights are cast to `compute_dtype` (bf16 by default -> MXU native with
      f32 accumulation; pass jnp.float32 for f32 parity at lower throughput).
      Biases stay f32 (bias-add / ReLU run on the f32 accumulator; v5e has no
      bf16 VPU path).
    """
    n = len(params)
    in_size = params[0][0].shape[0]
    out_size = params[-1][0].shape[1]
    layers, widths_in, widths_out = [], [], []
    prev_out = in_size
    for i, (w, b) in enumerate(params):
        k_dim = prev_out
        logical_out = w.shape[1]
        out_dim = logical_out if i == n - 1 else _round_up(logical_out, _LANE)
        w_p = jnp.zeros((k_dim, out_dim), compute_dtype)
        w_p = w_p.at[: w.shape[0], :logical_out].set(w.astype(compute_dtype))
        b_p = jnp.zeros((1, out_dim), jnp.float32)
        b_p = b_p.at[:, :logical_out].set(jnp.asarray(b, jnp.float32).reshape(1, -1))
        layers.append((w_p, b_p))
        widths_in.append(k_dim)
        widths_out.append(out_dim)
        prev_out = out_dim
    return dict(layers=layers, in_size=in_size, out_size=out_size,
                widths_in=widths_in, widths_out=widths_out,
                compute_dtype=compute_dtype)


# ----------------------------------------------------------------------------
# Kernel
# ----------------------------------------------------------------------------
def _make_segment_kernel(n_layers, relu_last):
    """Fused chain of `n_layers` Linear layers.

    Ref order: x_ref, W0, b0, ..., W{n-1}, b{n-1}, out_ref.
    Matmuls run on the MXU in the weights' dtype with f32 accumulation;
    bias-add / ReLU stay f32.  ReLU follows every layer, except the last one
    when `relu_last` is False (the FCNet output layer).
    """

    def kernel(x_ref, *refs):
        out_ref = refs[-1]
        wb = refs[:-1]
        h = x_ref[...]
        for i in range(n_layers):
            w = wb[2 * i][...]
            b = wb[2 * i + 1][...]
            h = jnp.dot(h.astype(w.dtype), w,
                        preferred_element_type=jnp.float32) + b
            if i < n_layers - 1 or relu_last:
                h = jnp.maximum(h, 0.0)      # F.relu on the f32 accumulator
        out_ref[...] = h.astype(out_ref.dtype)

    return kernel


# ----------------------------------------------------------------------------
# VMEM budgeting helpers
# ----------------------------------------------------------------------------
def _param_bytes(layer):
    w, b = layer
    return w.size * w.dtype.itemsize + b.size * b.dtype.itemsize


def _split_into_segments(prep, param_budget_bytes):
    """Greedy split of the layer chain so each segment's resident params
    (counted double-buffered, i.e. worst case) fit the budget."""
    segs, cur, cur_b = [], [], 0
    for i, layer in enumerate(prep["layers"]):
        nb = 2 * _param_bytes(layer)          # assume 2x (double-buffered) residency
        if cur and cur_b + nb > param_budget_bytes:
            segs.append(cur)
            cur, cur_b = [], 0
        # TODO(synk): a single layer larger than the budget still needs an
        # out-feature (N) tiling path; for now we rely on vmem_limit_bytes.
        cur.append(i)
        cur_b += nb
    segs.append(cur)
    return segs


def _pick_tile_b(batch, prep, segments, planning_budget):
    layers = prep["layers"]
    widths_in, widths_out = prep["widths_in"], prep["widths_out"]
    act_bytes = jnp.dtype(prep["compute_dtype"]).itemsize
    n_layers = len(layers)

    cap_rows = None
    for seg in segments:
        resident = 2 * sum(_param_bytes(layers[i]) for i in seg)
        is_final = seg[-1] == n_layers - 1
        in_w = widths_in[seg[0]]
        out_w = widths_out[seg[-1]]
        out_b = 4 if is_final else act_bytes
        max_w = max([in_w] + [widths_out[i] for i in seg])
        # double-buffered in/out streams + live in-kernel intermediates
        # (f32 accumulator + compute-dtype copy + f32 dot result).
        per_row = 2 * in_w * act_bytes + 2 * out_w * out_b + max_w * (8 + act_bytes)
        rows = (planning_budget - resident) // per_row
        cap_rows = rows if cap_rows is None else min(cap_rows, rows)

    cap_rows = max(_SUBLANE_BF16, (cap_rows // _SUBLANE_BF16) * _SUBLANE_BF16)
    tile_b = min(_MAX_TILE_B, _round_up(batch, _SUBLANE_BF16), cap_rows)
    # v7x megacore: ensure the "parallel" batch axis has >= 2 grid steps
    # whenever the batch can be split (negligible cost on v5e/v6e).
    if batch > _SUBLANE_BF16 and _round_up(batch, tile_b) // tile_b < 2:
        tile_b = _round_up((batch + 1) // 2, _SUBLANE_BF16)
    return tile_b


# ----------------------------------------------------------------------------
# pallas_call wrapper
# ----------------------------------------------------------------------------
_SINGLE_BUFFER_PARAMS_OK = None   # does this jax build accept pl.Buffered(1)?


def _run_segment(x, seg_layers, relu_last, out_dtype, tile_b, vmem_limit):
    global _SINGLE_BUFFER_PARAMS_OK

    batch_p, in_w = x.shape
    out_w = seg_layers[-1][0].shape[1]
    flat = [a for wb in seg_layers for a in wb]
    kernel = _make_segment_kernel(len(seg_layers), relu_last)

    def build(single_buffer_params):
        in_specs = [pl.BlockSpec((tile_b, in_w), lambda i: (i, 0))]
        for a in flat:
            # Constant index_map: weights/biases are DMA'd once and stay
            # VMEM-resident across batch tiles.  Single-buffer them when
            # supported (they never change; double buffering wastes VMEM).
            if single_buffer_params:
                spec = pl.BlockSpec(a.shape, lambda i: (0, 0),
                                    pipeline_mode=pl.Buffered(1))
            else:
                spec = pl.BlockSpec(a.shape, lambda i: (0, 0))
            in_specs.append(spec)
        return pl.pallas_call(
            kernel,
            out_shape=jax.ShapeDtypeStruct((batch_p, out_w), out_dtype),
            grid=(batch_p // tile_b,),
            in_specs=in_specs,
            out_specs=pl.BlockSpec((tile_b, out_w), lambda i: (i, 0)),
            compiler_params=pltpu.CompilerParams(
                dimension_semantics=("parallel",),   # 2 TCs on v7x; harmless elsewhere
                vmem_limit_bytes=vmem_limit),
        )

    modes = ([_SINGLE_BUFFER_PARAMS_OK] if _SINGLE_BUFFER_PARAMS_OK is not None
             else [True, False])
    last_err = None
    for sb in modes:
        try:
            out = build(sb)(x, *flat)
            if _SINGLE_BUFFER_PARAMS_OK is None:
                out = jax.block_until_ready(out)   # surface compile errors during probe
                _SINGLE_BUFFER_PARAMS_OK = sb
            return out
        except Exception as err:   # fall back to default (double) buffering
            last_err = err
    raise last_err


def fc_net_forward(state, prep):
    """Fused FCNet forward.  `prep` comes from prepare_fc_net_params().

    state: (batch, input_size) float array.
    """
    batch, in_size = state.shape
    if in_size != prep["in_size"]:
        raise ValueError("state feature dim does not match prepared params")

    capacity = _vmem_capacity_bytes()
    planning_budget = int(capacity * 0.65)     # working-set target
    vmem_limit = int(capacity * 0.85)          # explicit scoped-VMEM limit

    segments = _split_into_segments(prep, int(planning_budget * 0.6))
    tile_b = _pick_tile_b(batch, prep, segments, planning_budget)
    batch_p = _round_up(batch, tile_b)

    # Stream activations in the compute dtype (bf16 by default: numerically
    # identical to the previous in-kernel cast, half the HBM/DMA bytes).
    # Only materialize a padded copy when the batch needs padding; feature
    # dims are never padded around the kernel.
    compute_dtype = prep["compute_dtype"]
    if batch_p != batch:
        x = jnp.zeros((batch_p, in_size), compute_dtype)
        x = x.at[:batch, :].set(state.astype(compute_dtype))
    else:
        x = state.astype(compute_dtype)

    n_segs = len(segments)
    h = x
    for s, seg in enumerate(segments):
        is_final = s == n_segs - 1
        h = _run_segment(
            h,
            [prep["layers"][i] for i in seg],
            relu_last=not is_final,
            out_dtype=jnp.float32 if is_final else compute_dtype,
            tile_b=tile_b,
            vmem_limit=vmem_limit,
        )

    return h[:batch] if batch_p != batch else h


# ----------------------------------------------------------------------------
# Initialization mirroring FCNet.__init__ + reset_parameters, and references
# ----------------------------------------------------------------------------
def init_fc_net_params(key, input_size, output_size, hidden_sizes):
    """Deterministic init mirroring FCNet (distributions, not bit-exact values).

    Note: _hidden_init in the reference uses weight.size()[0] == out_features
    as "fan_in" (faithfully reproduced).  Biases keep PyTorch's default Linear
    init: uniform(-1/sqrt(in_features), 1/sqrt(in_features)).
    """
    sizes = [input_size] + list(hidden_sizes) + [output_size]
    params = []
    n_layers = len(sizes) - 1
    keys = jax.random.split(key, 2 * n_layers)
    for i in range(n_layers):
        fan_in = sizes[i]
        fan_out = sizes[i + 1]
        wkey, bkey = keys[2 * i], keys[2 * i + 1]
        if i == n_layers - 1:
            lim_w = 0.003                                 # output layer
        else:
            lim_w = 1.0 / jnp.sqrt(jnp.float32(fan_out))  # _hidden_init
        w = jax.random.uniform(
            wkey, (fan_in, fan_out), jnp.float32, minval=-lim_w, maxval=lim_w)
        lim_b = 1.0 / jnp.sqrt(jnp.float32(fan_in))
        b = jax.random.uniform(
            bkey, (1, fan_out), jnp.float32, minval=-lim_b, maxval=lim_b)
        params.append((w, b))
    return params


def fc_net_reference(state, params):
    """Pure-f32 JAX reference (PyTorch semantics)."""
    h = state
    n = len(params)
    for i, (w, b) in enumerate(params):
        h = h @ w + b
        if i < n - 1:
            h = jnp.maximum(h, 0.0)
    return h


def fc_net_reference_bf16(state, params):
    """Mirrors the kernel's bf16-input / f32-accumulate compute exactly."""
    h = state.astype(jnp.float32)
    n = len(params)
    for i, (w, b) in enumerate(params):
        h = jnp.dot(h.astype(jnp.bfloat16), w.astype(jnp.bfloat16),
                    preferred_element_type=jnp.float32) + b
        if i < n - 1:
            h = jnp.maximum(h, 0.0)
    return h


if __name__ == "__main__":
    # Small shapes consistent with FCNet(input_size, output_size, hidden_sizes).
    batch = 2
    input_size = 16
    hidden_sizes = [32, 32]
    output_size = 4

    key = jax.random.PRNGKey(0)
    pkey, xkey = jax.random.split(key)

    params = init_fc_net_params(pkey, input_size, output_size, hidden_sizes)
    state = jax.random.normal(xkey, (batch, input_size), jnp.float32)

    # One-time prep (pad hidden widths + cast to bf16); hot path never re-pads.
    prep = prepare_fc_net_params(params)

    out = fc_net_forward(state, prep)
    out = jax.block_until_ready(out)
    assert out.shape == (batch, output_size)

    # Exact-compute check against a bf16-mirrored reference (tight tolerance).
    ref_bf16 = fc_net_reference_bf16(state, params)
    assert jnp.allclose(out, ref_bf16, atol=1e-4, rtol=1e-4), "bf16-mirror mismatch"

    # Sanity check against the pure-f32 PyTorch-semantics reference
    # (looser tolerance: bf16 MXU inputs).
    ref_f32 = fc_net_reference(state, params)
    assert jnp.allclose(out, ref_f32, atol=5e-3, rtol=5e-2), "f32 reference mismatch"

    print("KERNEL_OK")
</pallas_src>

<mosaic_0001>
module attributes {stable_mosaic.version = 11 : i64} {
  func.func @kernel(%arg0: i32, %arg1: memref<16x16xbf16, #tpu.memory_space<vmem>>, %arg2: memref<16x128xbf16, #tpu.memory_space<vmem>>, %arg3: memref<1x128xf32, #tpu.memory_space<vmem>>, %arg4: memref<128x128xbf16, #tpu.memory_space<vmem>>, %arg5: memref<1x128xf32, #tpu.memory_space<vmem>>, %arg6: memref<128x4xbf16, #tpu.memory_space<vmem>>, %arg7: memref<1x4xf32, #tpu.memory_space<vmem>>, %arg8: memref<16x4xf32, #tpu.memory_space<vmem>>) attributes {dimension_semantics = [#tpu.dimension_semantics<parallel>], iteration_bounds = array<i64: 1>, scalar_prefetch = 0 : i64, scratch_operands = 0 : i64, tpu.core_type = #tpu.core_type<tc>, window_params = [{transform_indices = @transform_0, window_bounds = array<i64: 16, 16>}, {pipeline_mode = #tpu.pipeline_mode<synchronous>, transform_indices = @transform_1, window_bounds = array<i64: 16, 128>}, {pipeline_mode = #tpu.pipeline_mode<synchronous>, transform_indices = @transform_2, window_bounds = array<i64: 1, 128>}, {pipeline_mode = #tpu.pipeline_mode<synchronous>, transform_indices = @transform_3, window_bounds = array<i64: 128, 128>}, {pipeline_mode = #tpu.pipeline_mode<synchronous>, transform_indices = @transform_4, window_bounds = array<i64: 1, 128>}, {pipeline_mode = #tpu.pipeline_mode<synchronous>, transform_indices = @transform_5, window_bounds = array<i64: 128, 4>}, {pipeline_mode = #tpu.pipeline_mode<synchronous>, transform_indices = @transform_6, window_bounds = array<i64: 1, 4>}, {transform_indices = @transform_7, window_bounds = array<i64: 16, 4>}]} {
    %c0 = arith.constant 0 : index
    %c0_0 = arith.constant 0 : index
    %0 = vector.load %arg1[%c0, %c0_0] : memref<16x16xbf16, #tpu.memory_space<vmem>>, vector<16x16xbf16>
    %c0_1 = arith.constant 0 : index
    %c0_2 = arith.constant 0 : index
    %1 = vector.load %arg2[%c0_1, %c0_2] : memref<16x128xbf16, #tpu.memory_space<vmem>>, vector<16x128xbf16>
    %c0_3 = arith.constant 0 : index
    %c0_4 = arith.constant 0 : index
    %2 = vector.load %arg3[%c0_3, %c0_4] : memref<1x128xf32, #tpu.memory_space<vmem>>, vector<1x128xf32>
    %cst = arith.constant dense<0.000000e+00> : vector<16x128xf32>
    %3 = tpu.matmul %0, %1, %cst {dimension_numbers = #tpu.dot_dimension_numbers<[1], [0], [0], [1], [0, 0, 1, 1], [], []>} : vector<16x16xbf16>, vector<16x128xbf16>, vector<16x128xf32> -> vector<16x128xf32>
    %4 = vector.broadcast %2 : vector<1x128xf32> to vector<16x128xf32>
    %5 = arith.addf %3, %4 : vector<16x128xf32>
    %cst_5 = arith.constant 0.000000e+00 : f32
    %6 = vector.broadcast %cst_5 : f32 to vector<16x128xf32>
    %7 = arith.maximumf %5, %6 : vector<16x128xf32>
    %c0_6 = arith.constant 0 : index
    %c0_7 = arith.constant 0 : index
    %8 = vector.load %arg4[%c0_6, %c0_7] : memref<128x128xbf16, #tpu.memory_space<vmem>>, vector<128x128xbf16>
    %c0_8 = arith.constant 0 : index
    %c0_9 = arith.constant 0 : index
    %9 = vector.load %arg5[%c0_8, %c0_9] : memref<1x128xf32, #tpu.memory_space<vmem>>, vector<1x128xf32>
    %10 = arith.truncf %7 : vector<16x128xf32> to vector<16x128xbf16>
    %cst_10 = arith.constant dense<0.000000e+00> : vector<16x128xf32>
    %11 = tpu.matmul %10, %8, %cst_10 {dimension_numbers = #tpu.dot_dimension_numbers<[1], [0], [0], [1], [0, 0, 1, 1], [], []>} : vector<16x128xbf16>, vector<128x128xbf16>, vector<16x128xf32> -> vector<16x128xf32>
    %12 = vector.broadcast %9 : vector<1x128xf32> to vector<16x128xf32>
    %13 = arith.addf %11, %12 : vector<16x128xf32>
    %cst_11 = arith.constant 0.000000e+00 : f32
    %14 = vector.broadcast %cst_11 : f32 to vector<16x128xf32>
    %15 = arith.maximumf %13, %14 : vector<16x128xf32>
    %c0_12 = arith.constant 0 : index
    %c0_13 = arith.constant 0 : index
    %16 = vector.load %arg6[%c0_12, %c0_13] : memref<128x4xbf16, #tpu.memory_space<vmem>>, vector<128x4xbf16>
    %c0_14 = arith.constant 0 : index
    %c0_15 = arith.constant 0 : index
    %17 = vector.load %arg7[%c0_14, %c0_15] : memref<1x4xf32, #tpu.memory_space<vmem>>, vector<1x4xf32>
    %18 = arith.truncf %15 : vector<16x128xf32> to vector<16x128xbf16>
    %cst_16 = arith.constant dense<0.000000e+00> : vector<16x4xf32>
    %19 = tpu.matmul %18, %16, %cst_16 {dimension_numbers = #tpu.dot_dimension_numbers<[1], [0], [0], [1], [0, 0, 1, 1], [], []>} : vector<16x128xbf16>, vector<128x4xbf16>, vector<16x4xf32> -> vector<16x4xf32>
    %20 = vector.broadcast %17 : vector<1x4xf32> to vector<16x4xf32>
    %21 = arith.addf %19, %20 : vector<16x4xf32>
    %c0_17 = arith.constant 0 : index
    %c0_18 = arith.constant 0 : index
    %22 = vector.load %arg8[%c0_17, %c0_18] : memref<16x4xf32, #tpu.memory_space<vmem>>, vector<16x4xf32>
    tpu.vector_store %arg8[%c0_17, %c0_18], %21 {strides = array<i32>} : memref<16x4xf32, #tpu.memory_space<vmem>>, vector<16x4xf32>,
    return
  }
  func.func @transform_0(%arg0: i32) -> (i32, i32) {
    %c0_i32 = arith.constant 0 : i32
    %c0_i32_0 = arith.constant 0 : i32
    return %arg0, %c0_i32 : i32, i32
  }
  func.func @transform_1(%arg0: i32) -> (i32, i32) {
    %c0_i32 = arith.constant 0 : i32
    %c0_i32_0 = arith.constant 0 : i32
    %c0_i32_1 = arith.constant 0 : i32
    return %c0_i32, %c0_i32_0 : i32, i32
  }
  func.func @transform_2(%arg0: i32) -> (i32, i32) {
    %c0_i32 = arith.constant 0 : i32
    %c0_i32_0 = arith.constant 0 : i32
    %c0_i32_1 = arith.constant 0 : i32
    return %c0_i32, %c0_i32_0 : i32, i32
  }
  func.func @transform_3(%arg0: i32) -> (i32, i32) {
    %c0_i32 = arith.constant 0 : i32
    %c0_i32_0 = arith.constant 0 : i32
    %c0_i32_1 = arith.constant 0 : i32
    return %c0_i32, %c0_i32_0 : i32, i32
  }
  func.func @transform_4(%arg0: i32) -> (i32, i32) {
    %c0_i32 = arith.constant 0 : i32
    %c0_i32_0 = arith.constant 0 : i32
    %c0_i32_1 = arith.constant 0 : i32
    return %c0_i32, %c0_i32_0 : i32, i32
  }
  func.func @transform_5(%arg0: i32) -> (i32, i32) {
    %c0_i32 = arith.constant 0 : i32
    %c0_i32_0 = arith.constant 0 : i32
    %c0_i32_1 = arith.constant 0 : i32
    return %c0_i32, %c0_i32_0 : i32, i32
  }
  func.func @transform_6(%arg0: i32) -> (i32, i32) {
    %c0_i32 = arith.constant 0 : i32
    %c0_i32_0 = arith.constant 0 : i32
    %c0_i32_1 = arith.constant 0 : i32
    return %c0_i32, %c0_i32_0 : i32, i32
  }
  func.func @transform_7(%arg0: i32) -> (i32, i32) {
    %c0_i32 = arith.constant 0 : i32
    %c0_i32_0 = arith.constant 0 : i32
    return %arg0, %c0_i32 : i32, i32
  }
}

module attributes {stable_mosaic.version = 11 : i64} {
  func.func @kernel(%arg0: i32, %arg1: memref<16x16xbf16, #tpu.memory_space<vmem>>, %arg2: memref<16x128xbf16, #tpu.memory_space<vmem>>, %arg3: memref<1x128xf32, #tpu.memory_space<vmem>>, %arg4: memref<128x128xbf16, #tpu.memory_space<vmem>>, %arg5: memref<1x128xf32, #tpu.memory_space<vmem>>, %arg6: memref<128x4xbf16, #tpu.memory_space<vmem>>, %arg7: memref<1x4xf32, #tpu.memory_space<vmem>>, %arg8: memref<16x4xf32, #tpu.memory_space<vmem>>) attributes {dimension_semantics = [#tpu.dimension_semantics<parallel>], iteration_bounds = array<i64: 1>, scalar_prefetch = 0 : i64, scratch_operands = 0 : i64, tpu.core_type = #tpu.core_type<tc>, window_params = [{transform_indices = @transform_0, window_bounds = array<i64: 16, 16>}, {pipeline_mode = #tpu.pipeline_mode<synchronous>, transform_indices = @transform_1, window_bounds = array<i64: 16, 128>}, {pipeline_mode = #tpu.pipeline_mode<synchronous>, transform_indices = @transform_2, window_bounds = array<i64: 1, 128>}, {pipeline_mode = #tpu.pipeline_mode<synchronous>, transform_indices = @transform_3, window_bounds = array<i64: 128, 128>}, {pipeline_mode = #tpu.pipeline_mode<synchronous>, transform_indices = @transform_4, window_bounds = array<i64: 1, 128>}, {pipeline_mode = #tpu.pipeline_mode<synchronous>, transform_indices = @transform_5, window_bounds = array<i64: 128, 4>}, {pipeline_mode = #tpu.pipeline_mode<synchronous>, transform_indices = @transform_6, window_bounds = array<i64: 1, 4>}, {transform_indices = @transform_7, window_bounds = array<i64: 16, 4>}]} {
    %c0 = arith.constant 0 : index
    %c0_0 = arith.constant 0 : index
    %0 = vector.load %arg1[%c0, %c0_0] : memref<16x16xbf16, #tpu.memory_space<vmem>>, vector<16x16xbf16>
    %c0_1 = arith.constant 0 : index
    %c0_2 = arith.constant 0 : index
    %1 = vector.load %arg2[%c0_1, %c0_2] : memref<16x128xbf16, #tpu.memory_space<vmem>>, vector<16x128xbf16>
    %c0_3 = arith.constant 0 : index
    %c0_4 = arith.constant 0 : index
    %2 = vector.load %arg3[%c0_3, %c0_4] : memref<1x128xf32, #tpu.memory_space<vmem>>, vector<1x128xf32>
    %cst = arith.constant dense<0.000000e+00> : vector<16x128xf32>
    %3 = tpu.matmul %0, %1, %cst {dimension_numbers = #tpu.dot_dimension_numbers<[1], [0], [0], [1], [0, 0, 1, 1], [], []>} : vector<16x16xbf16>, vector<16x128xbf16>, vector<16x128xf32> -> vector<16x128xf32>
    %4 = vector.broadcast %2 : vector<1x128xf32> to vector<16x128xf32>
    %5 = arith.addf %3, %4 : vector<16x128xf32>
    %cst_5 = arith.constant 0.000000e+00 : f32
    %6 = vector.broadcast %cst_5 : f32 to vector<16x128xf32>
    %7 = arith.maximumf %5, %6 : vector<16x128xf32>
    %c0_6 = arith.constant 0 : index
    %c0_7 = arith.constant 0 : index
    %8 = vector.load %arg4[%c0_6, %c0_7] : memref<128x128xbf16, #tpu.memory_space<vmem>>, vector<128x128xbf16>
    %c0_8 = arith.constant 0 : index
    %c0_9 = arith.constant 0 : index
    %9 = vector.load %arg5[%c0_8, %c0_9] : memref<1x128xf32, #tpu.memory_space<vmem>>, vector<1x128xf32>
    %10 = arith.truncf %7 : vector<16x128xf32> to vector<16x128xbf16>
    %cst_10 = arith.constant dense<0.000000e+00> : vector<16x128xf32>
    %11 = tpu.matmul %10, %8, %cst_10 {dimension_numbers = #tpu.dot_dimension_numbers<[1], [0], [0], [1], [0, 0, 1, 1], [], []>} : vector<16x128xbf16>, vector<128x128xbf16>, vector<16x128xf32> -> vector<16x128xf32>
    %12 = vector.broadcast %9 : vector<1x128xf32> to vector<16x128xf32>
    %13 = arith.addf %11, %12 : vector<16x128xf32>
    %cst_11 = arith.constant 0.000000e+00 : f32
    %14 = vector.broadcast %cst_11 : f32 to vector<16x128xf32>
    %15 = arith.maximumf %13, %14 : vector<16x128xf32>
    %c0_12 = arith.constant 0 : index
    %c0_13 = arith.constant 0 : index
    %16 = vector.load %arg6[%c0_12, %c0_13] : memref<128x4xbf16, #tpu.memory_space<vmem>>, vector<128x4xbf16>
    %c0_14 = arith.constant 0 : index
    %c0_15 = arith.constant 0 : index
    %17 = vector.load %arg7[%c0_14, %c0_15] : memref<1x4xf32, #tpu.memory_space<vmem>>, vector<1x4xf32>
    %18 = arith.truncf %15 : vector<16x128xf32> to vector<16x128xbf16>
    %cst_16 = arith.constant dense<0.000000e+00> : vector<16x4xf32>
    %19 = tpu.matmul %18, %16, %cst_16 {dimension_numbers = #tpu.dot_dimension_numbers<[1], [0], [0], [1], [0, 0, 1, 1], [], []>} : vector<16x128xbf16>, vector<128x4xbf16>, vector<16x4xf32> -> vector<16x4xf32>
    %20 = vector.broadcast %17 : vector<1x4xf32> to vector<16x4xf32>
    %21 = arith.addf %19, %20 : vector<16x4xf32>
    %c0_17 = arith.constant 0 : index
    %c0_18 = arith.constant 0 : index
    %22 = vector.load %arg8[%c0_17, %c0_18] : memref<16x4xf32, #tpu.memory_space<vmem>>, vector<16x4xf32>
    tpu.vector_store %arg8[%c0_17, %c0_18], %21 {strides = array<i32>} : memref<16x4xf32, #tpu.memory_space<vmem>>, vector<16x4xf32>,
    return
  }
  func.func @transform_0(%arg0: i32) -> (i32, i32) {
    %c0_i32 = arith.constant 0 : i32
    %c0_i32_0 = arith.constant 0 : i32
    return %arg0, %c0_i32 : i32, i32
  }
  func.func @transform_1(%arg0: i32) -> (i32, i32) {
    %c0_i32 = arith.constant 0 : i32
    %c0_i32_0 = arith.constant 0 : i32
    %c0_i32_1 = arith.constant 0 : i32
    return %c0_i32, %c0_i32_0 : i32, i32
  }
  func.func @transform_2(%arg0: i32) -> (i32, i32) {
    %c0_i32 = arith.constant 0 : i32
    %c0_i32_0 = arith.constant 0 : i32
    %c0_i32_1 = arith.constant 0 : i32
    return %c0_i32, %c0_i32_0 : i32, i32
  }
  func.func @transform_3(%arg0: i32) -> (i32, i32) {
    %c0_i32 = arith.constant 0 : i32
    %c0_i32_0 = arith.constant 0 : i32
    %c0_i32_1 = arith.constant 0 : i32
    return %c0_i32, %c0_i32_0 : i32, i32
  }
  func.func @transform_4(%arg0: i32) -> (i32, i32) {
    %c0_i32 = arith.constant 0 : i32
    %c0_i32_0 = arith.constant 0 : i32
    %c0_i32_1 = arith.constant 0 : i32
    return %c0_i32, %c0_i32_0 : i32, i32
  }
  func.func @transform_5(%arg0: i32) -> (i32, i32) {
    %c0_i32 = arith.constant 0 : i32
    %c0_i32_0 = arith.constant 0 : i32
    %c0_i32_1 = arith.constant 0 : i32
    return %c0_i32, %c0_i32_0 : i32, i32
  }
  func.func @transform_6(%arg0: i32) -> (i32, i32) {
    %c0_i32 = arith.constant 0 : i32
    %c0_i32_0 = arith.constant 0 : i32
    %c0_i32_1 = arith.constant 0 : i32
    return %c0_i32, %c0_i32_0 : i32, i32
  }
  func.func @transform_7(%arg0: i32) -> (i32, i32) {
    %c0_i32 = arith.constant 0 : i32
    %c0_i32_0 = arith.constant 0 : i32
    return %arg0, %c0_i32 : i32, i32
  }
}

</mosaic_0001>

<llo_original>
// kernel: tpu_custom_call.1
$region0: #{tpu_custom_call.1}
  #allocation0 [shape = 'u32[]', space=smem, size = 0x4, offset = 0x4, fixed_abs, tag = 'smem constant byte address 0x4 - core index']
  #allocation1 [shape = 'u32[144,128]{1,0:T(1,128)}', space=vmem, size = 0x12000, scoped, tag = 'internal scratch']
  %s0 = inlined_call_operand.vmem [shape: bf16[16,16], index: 0, kind: input, shape index: {}]
  %s1 = inlined_call_operand.hbm [shape: bf16[16,128], index: 1, kind: input, shape index: {}]
  %s2 = inlined_call_operand.vmem [shape: f32[1,128], index: 2, kind: input, shape index: {}]
  %s3 = inlined_call_operand.vmem [shape: bf16[128,128], index: 3, kind: input, shape index: {}]
  %s4 = inlined_call_operand.vmem [shape: f32[1,128], index: 4, kind: input, shape index: {}]
  %s5 = inlined_call_operand.vmem [shape: bf16[128,4], index: 5, kind: input, shape index: {}]
  %s6 = inlined_call_operand.vmem [shape: f32[1,4], index: 6, kind: input, shape index: {}]
  %s7 = inlined_call_operand.vmem [shape: f32[16,4], index: 7, kind: output, shape index: {}]
  %s8 = sld [smem:[#allocation0]]
  $region42: #{tpu_custom_call.1} parent=0
    _
  %s10 = ssub.s32 1, %s8
  %s11 = scalar_select 0, %s10, %s8
  $region1: #{tpu_custom_call.1} parent=0
    #allocation2 [shape = 'u8[4096]{0}', space=vmem, size = 0x1000, scoped, tag = 'input window, operand 1, single buffered']
    #allocation3 [shape = 's32[1]{0}', space=sflag, size = 0x4, scoped, tag = 'scoped memory for tpu_custom_call.1']
    %12 = vsyncpa [#allocation3], 0
    // Predicated region
    $region2: #{tpu_custom_call.1} parent=1 // pred_check
      _
    $region3: #{tpu_custom_call.1} parent=1 // pred_check_branch
      %14 = sbr.rel (0) target = $region5
    $region4: #{tpu_custom_call.1} parent=1 // pred_region
      _
    $region5: #{tpu_custom_call.1} parent=1 // pred_fallthru
      _
    // Predicated region
    $region6: #{tpu_custom_call.1} parent=1 // pred_check
      _
    $region7: #{tpu_custom_call.1} parent=1 // pred_check_branch
      %16 = sbr.rel (0) target = $region9
    $region8: #{tpu_custom_call.1} parent=1 // pred_region
      %s18 = ssub.s32 128, 128
      %19 = vsyncadd [#allocation3], %s18
      %s20 = sshll.u32 [#allocation2], 4
      %s21 = int_to_ptr.vmem [resolvable:$true] %s20
      %26 = dma.hbm_to_vmem [thread:$0]  %s1, 128, %s21, [#allocation3], 64, 64, 4
    $region9: #{tpu_custom_call.1} parent=1 // pred_fallthru
      _
    // Predicated region
    $region10: #{tpu_custom_call.1} parent=1 // pred_check
      _
    $region11: #{tpu_custom_call.1} parent=1 // pred_check_branch
      %28 = sbr.rel (0) target = $region13
    $region12: #{tpu_custom_call.1} parent=1 // pred_region
      _
    $region13: #{tpu_custom_call.1} parent=1 // pred_fallthru
      _
    // Predicated region
    $region14: #{tpu_custom_call.1} parent=1 // pred_check
      _
    $region15: #{tpu_custom_call.1} parent=1 // pred_check_branch
      %30 = sbr.rel (0) target = $region17
    $region16: #{tpu_custom_call.1} parent=1 // pred_region
      _
    $region17: #{tpu_custom_call.1} parent=1 // pred_fallthru
      _
    // Predicated region
    $region18: #{tpu_custom_call.1} parent=1 // pred_check
      _
    $region19: #{tpu_custom_call.1} parent=1 // pred_check_branch
      %32 = sbr.rel (0) target = $region21
    $region20: #{tpu_custom_call.1} parent=1 // pred_region
      _
    $region21: #{tpu_custom_call.1} parent=1 // pred_fallthru
      _
    // Predicated region
    $region22: #{tpu_custom_call.1} parent=1 // pred_check
      _
    $region23: #{tpu_custom_call.1} parent=1 // pred_check_branch
      %34 = sbr.rel (0) target = $region25
    $region24: #{tpu_custom_call.1} parent=1 // pred_region
      _
    $region25: #{tpu_custom_call.1} parent=1 // pred_fallthru
      _
    // Predicated region
    $region26: #{tpu_custom_call.1} parent=1 // pred_check
      _
    $region27: #{tpu_custom_call.1} parent=1 // pred_check_branch
      %36 = sbr.rel (0) target = $region29
    $region28: #{tpu_custom_call.1} parent=1 // pred_region
      _
    $region29: #{tpu_custom_call.1} parent=1 // pred_fallthru
      _
    // Predicated region
    $region30: #{tpu_custom_call.1} parent=1 // pred_check
      _
    $region31: #{tpu_custom_call.1} parent=1 // pred_check_branch
      %38 = sbr.rel (0) target = $region33
    $region32: #{tpu_custom_call.1} parent=1 // pred_region
      %39 = dma.done [#allocation3], 128
    $region33: #{tpu_custom_call.1} parent=1 // pred_fallthru
      _
    %v41 = vld [vmem:[%s0] sm:$0xf]
    %v42 = vld [vmem:[%s0 + $0x4] sm:$0xf]
    %v43 = vld [vmem:[#allocation2] sm:$0xf]
    %v44 = vld [vmem:[#allocation2 + $0x4] sm:$0xf]
    %v45 = vld [vmem:[%s2] sm:$0x1]
    %v47 = vlaneseq
    %v48 = vshrl.u32 %v47, 7
    %v49 = vsub.s32 0, %v48
    %v50 = vrot.slane %v45, %v49
    %v54 = vunpack.c.l.b16 %v41
    %v55 = vunpack.c.l.b16 %v42
    %v56 = vpack.c.b16 %v55, %v54
    %v59 = vunpack.c.l.b16 %v43
    %v60 = vunpack.c.l.b16 %v44
    %v61 = vpack.c.b16 %v60, %v59
    %vm63 = vcmask 130048
    %v65 = vsel %vm63, %v56, 0
    %67 = vmatprep.subr.bf16.mxu0 0
    %68 = vmatpush1.bf16.msra.mxu0 %v61
    %69 = vmatprep.subr.bf16.mxu0 0
    %70 = vmatpush1.bf16.msra.mxu0 0
    %71 = vmatprep.subr.bf16.mxu0 0
    %72 = vmatpush1.bf16.msra.mxu0 0
    %73 = vmatprep.subr.bf16.mxu0 0
    %74 = vmatpush1.bf16.msra.mxu0 0
    %75 = vmatprep.subr.bf16.mxu0 0
    %76 = vmatpush1.bf16.msra.mxu0 0
    %77 = vmatprep.subr.bf16.mxu0 0
    %78 = vmatpush1.bf16.msra.mxu0 0
    %79 = vmatprep.subr.bf16.mxu0 0
    %80 = vmatpush1.bf16.msra.mxu0 0
    %81 = vmatprep.subr.bf16.mxu0 0
    %82 = vmatpush1.bf16.msra.mxu0 0
    %83 = vmatprep.subr.bf16.mxu0 0
    %84 = vmatpush1.bf16.msra.mxu0 0
    %85 = vmatprep.subr.bf16.mxu0 0
    %86 = vmatpush1.bf16.msra.mxu0 0
    %87 = vmatprep.subr.bf16.mxu0 0
    %88 = vmatpush1.bf16.msra.mxu0 0
    %89 = vmatprep.subr.bf16.mxu0 0
    %90 = vmatpush1.bf16.msra.mxu0 0
    %91 = vmatprep.subr.bf16.mxu0 0
    %92 = vmatpush1.bf16.msra.mxu0 0
    %93 = vmatprep.subr.bf16.mxu0 0
    %94 = vmatpush1.bf16.msra.mxu0 0
    %95 = vmatprep.subr.bf16.mxu0 0
    %96 = vmatpush1.bf16.msra.mxu0 0
    %97 = vmatprep.subr.bf16.mxu0 0
    %98 = vmatpush1.bf16.msra.mxu0 0
    %99 = vmatprep.mubr.bf16.mxu0 0
    %100 = vmatmul.mubr.bf16.gmra.mrb[0].mxu0 %v65
    %v101 = vpop.f32.mrb[0].mxu0
    %v102 = vadd.f32 %v50, %v101
    %v103 = vpop.f32.mrb[0].mxu0
    %v104 = vpop.f32.mrb[0].mxu0
    %v105 = vadd.f32 %v50, %v104
    %v106 = vpop.f32.mrb[0].mxu0
    %107 = vdwg.mxu0
    %v108 = vmax.f32 %v102, 0.0
    %v109 = vmax.f32 %v105, 0.0
    %v110 = vld [vmem:[%s3] sm:$0xf]
    %v111 = vld [vmem:[%s3 + $0x4] sm:$0xf]
    %v112 = vld [vmem:[%s3 + $0x8] sm:$0xf]
    %v113 = vld [vmem:[%s3 + $0xc] sm:$0xf]
    %v114 = vld [vmem:[%s3 + $0x10] sm:$0xf]
    %v115 = vld [vmem:[%s3 + $0x14] sm:$0xf]
    %v116 = vld [vmem:[%s3 + $0x18] sm:$0xf]
    %v117 = vld [vmem:[%s3 + $0x1c] sm:$0xf]
    %v118 = vld [vmem:[%s3 + $0x20] sm:$0xf]
    %v119 = vld [vmem:[%s3 + $0x24] sm:$0xf]
    %v120 = vld [vmem:[%s3 + $0x28] sm:$0xf]
    %v121 = vld [vmem:[%s3 + $0x2c] sm:$0xf]
    %v122 = vld [vmem:[%s3 + $0x30] sm:$0xf]
    %v123 = vld [vmem:[%s3 + $0x34] sm:$0xf]
    %v124 = vld [vmem:[%s3 + $0x38] sm:$0xf]
    %v125 = vld [vmem:[%s3 + $0x3c] sm:$0xf]
    %v126 = vld [vmem:[%s4] sm:$0x1]
    %v127 = vpack.c.bf16 %v109, %v108
    %v129 = vlaneseq
    %v130 = vshrl.u32 %v129, 7
    %v131 = vsub.s32 0, %v130
    %v132 = vrot.slane %v126, %v131
    %v150 = vunpack.c.l.b16 %v110
    %v151 = vunpack.c.l.b16 %v111
    %v152 = vunpack.c.l.b16 %v112
    %v153 = vunpack.c.l.b16 %v113
    %v154 = vunpack.c.l.b16 %v114
    %v155 = vunpack.c.l.b16 %v115
    %v156 = vunpack.c.l.b16 %v116
    %v157 = vunpack.c.l.b16 %v117
    %v158 = vunpack.c.l.b16 %v118
    %v159 = vunpack.c.l.b16 %v119
    %v160 = vunpack.c.l.b16 %v120
    %v161 = vunpack.c.l.b16 %v121
    %v162 = vunpack.c.l.b16 %v122
    %v163 = vunpack.c.l.b16 %v123
    %v164 = vunpack.c.l.b16 %v124
    %v165 = vunpack.c.l.b16 %v125
    %v166 = vpack.c.b16 %v151, %v150
    %v167 = vpack.c.b16 %v153, %v152
    %v168 = vpack.c.b16 %v155, %v154
    %v169 = vpack.c.b16 %v157, %v156
    %v170 = vpack.c.b16 %v159, %v158
    %v171 = vpack.c.b16 %v161, %v160
    %v172 = vpack.c.b16 %v163, %v162
    %v173 = vpack.c.b16 %v165, %v164
    %182 = vmatprep.subr.bf16.mxu0 0
    %183 = vmatpush1.bf16.msra.mxu0 %v166
    %184 = vmatprep.subr.bf16.mxu0 0
    %185 = vmatpush1.bf16.msra.mxu0 %v167
    %186 = vmatprep.subr.bf16.mxu0 0
    %187 = vmatpush1.bf16.msra.mxu0 %v168
    %188 = vmatprep.subr.bf16.mxu0 0
    %189 = vmatpush1.bf16.msra.mxu0 %v169
    %190 = vmatprep.subr.bf16.mxu0 0
    %191 = vmatpush1.bf16.msra.mxu0 %v170
    %192 = vmatprep.subr.bf16.mxu0 0
    %193 = vmatpush1.bf16.msra.mxu0 %v171
    %194 = vmatprep.subr.bf16.mxu0 0
    %195 = vmatpush1.bf16.msra.mxu0 %v172
    %196 = vmatprep.subr.bf16.mxu0 0
    %197 = vmatpush1.bf16.msra.mxu0 %v173
    %198 = vmatprep.subr.bf16.mxu0 0
    %199 = vmatpush1.bf16.msra.mxu0 0
    %200 = vmatprep.subr.bf16.mxu0 0
    %201 = vmatpush1.bf16.msra.mxu0 0
    %202 = vmatprep.subr.bf16.mxu0 0
    %203 = vmatpush1.bf16.msra.mxu0 0
    %204 = vmatprep.subr.bf16.mxu0 0
    %205 = vmatpush1.bf16.msra.mxu0 0
    %206 = vmatprep.subr.bf16.mxu0 0
    %207 = vmatpush1.bf16.msra.mxu0 0
    %208 = vmatprep.subr.bf16.mxu0 0
    %209 = vmatpush1.bf16.msra.mxu0 0
    %210 = vmatprep.subr.bf16.mxu0 0
    %211 = vmatpush1.bf16.msra.mxu0 0
    %212 = vmatprep.subr.bf16.mxu0 0
    %213 = vmatpush1.bf16.msra.mxu0 0
    %214 = vmatprep.mubr.bf16.mxu0 0
    %215 = vmatmul.mubr.bf16.gmra.mrb[0].mxu0 %v127
    %v216 = vpop.f32.mrb[0].mxu0
    %v217 = vadd.f32 %v132, %v216
    %v218 = vpop.f32.mrb[0].mxu0
    %v219 = vpop.f32.mrb[0].mxu0
    %v220 = vadd.f32 %v132, %v219
    %v221 = vpop.f32.mrb[0].mxu0
    %222 = vdwg.mxu0
    %v223 = vmax.f32 %v217, 0.0
    %v224 = vmax.f32 %v220, 0.0
    %v225 = vld [vmem:[%s5] sm:$0xf]
    %v226 = vld [vmem:[%s5 + $0x4] sm:$0xf]
    %v227 = vld [vmem:[%s5 + $0x8] sm:$0xf]
    %v228 = vld [vmem:[%s5 + $0xc] sm:$0xf]
    %v229 = vld [vmem:[%s5 + $0x10] sm:$0xf]
    %v230 = vld [vmem:[%s5 + $0x14] sm:$0xf]
    %v231 = vld [vmem:[%s5 + $0x18] sm:$0xf]
    %v232 = vld [vmem:[%s5 + $0x1c] sm:$0xf]
    %v233 = vld [vmem:[%s5 + $0x20] sm:$0xf]
    %v234 = vld [vmem:[%s5 + $0x24] sm:$0xf]
    %v235 = vld [vmem:[%s5 + $0x28] sm:$0xf]
    %v236 = vld [vmem:[%s5 + $0x2c] sm:$0xf]
    %v237 = vld [vmem:[%s5 + $0x30] sm:$0xf]
    %v238 = vld [vmem:[%s5 + $0x34] sm:$0xf]
    %v239 = vld [vmem:[%s5 + $0x38] sm:$0xf]
    %v240 = vld [vmem:[%s5 + $0x3c] sm:$0xf]
    %v241 = vld [vmem:[%s6] sm:$0x1]
    %v242 = vpack.c.bf16 %v224, %v223
    %v244 = vlaneseq
    %v245 = vshrl.u32 %v244, 7
    %v246 = vsub.s32 0, %v245
    %v247 = vrot.slane %v241, %v246
    %v265 = vunpack.c.l.b16 %v225
    %v266 = vunpack.c.l.b16 %v226
    %v267 = vunpack.c.l.b16 %v227
    %v268 = vunpack.c.l.b16 %v228
    %v269 = vunpack.c.l.b16 %v229
    %v270 = vunpack.c.l.b16 %v230
    %v271 = vunpack.c.l.b16 %v231
    %v272 = vunpack.c.l.b16 %v232
    %v273 = vunpack.c.l.b16 %v233
    %v274 = vunpack.c.l.b16 %v234
    %v275 = vunpack.c.l.b16 %v235
    %v276 = vunpack.c.l.b16 %v236
    %v277 = vunpack.c.l.b16 %v237
    %v278 = vunpack.c.l.b16 %v238
    %v279 = vunpack.c.l.b16 %v239
    %v280 = vunpack.c.l.b16 %v240
    %v281 = vpack.c.b16 %v266, %v265
    %v282 = vpack.c.b16 %v268, %v267
    %v283 = vpack.c.b16 %v270, %v269
    %v284 = vpack.c.b16 %v272, %v271
    %v285 = vpack.c.b16 %v274, %v273
    %v286 = vpack.c.b16 %v276, %v275
    %v287 = vpack.c.b16 %v278, %v277
    %v288 = vpack.c.b16 %v280, %v279
    %297 = vmatprep.subr.bf16.mxu0 0
    %298 = vmatpush1.bf16.msra.mxu0 %v281
    %299 = vmatprep.subr.bf16.mxu0 0
    %300 = vmatpush1.bf16.msra.mxu0 %v282
    %301 = vmatprep.subr.bf16.mxu0 0
    %302 = vmatpush1.bf16.msra.mxu0 %v283
    %303 = vmatprep.subr.bf16.mxu0 0
    %304 = vmatpush1.bf16.msra.mxu0 %v284
    %305 = vmatprep.subr.bf16.mxu0 0
    %306 = vmatpush1.bf16.msra.mxu0 %v285
    %307 = vmatprep.subr.bf16.mxu0 0
    %308 = vmatpush1.bf16.msra.mxu0 %v286
    %309 = vmatprep.subr.bf16.mxu0 0
    %310 = vmatpush1.bf16.msra.mxu0 %v287
    %311 = vmatprep.subr.bf16.mxu0 0
    %312 = vmatpush1.bf16.msra.mxu0 %v288
    %313 = vmatprep.subr.bf16.mxu0 0
    %314 = vmatpush1.bf16.msra.mxu0 0
    %315 = vmatprep.subr.bf16.mxu0 0
    %316 = vmatpush1.bf16.msra.mxu0 0
    %317 = vmatprep.subr.bf16.mxu0 0
    %318 = vmatpush1.bf16.msra.mxu0 0
    %319 = vmatprep.subr.bf16.mxu0 0
    %320 = vmatpush1.bf16.msra.mxu0 0
    %321 = vmatprep.subr.bf16.mxu0 0
    %322 = vmatpush1.bf16.msra.mxu0 0
    %323 = vmatprep.subr.bf16.mxu0 0
    %324 = vmatpush1.bf16.msra.mxu0 0
    %325 = vmatprep.subr.bf16.mxu0 0
    %326 = vmatpush1.bf16.msra.mxu0 0
    %327 = vmatprep.subr.bf16.mxu0 0
    %328 = vmatpush1.bf16.msra.mxu0 0
    %329 = vmatprep.mubr.bf16.mxu0 0
    %330 = vmatmul.mubr.bf16.gmra.mrb[0].mxu0 %v242
    %v331 = vpop.f32.mrb[0].mxu0
    %v332 = vadd.f32 %v247, %v331
    %v333 = vpop.f32.mrb[0].mxu0
    %v334 = vpop.f32.mrb[0].mxu0
    %v335 = vadd.f32 %v247, %v334
    %v336 = vpop.f32.mrb[0].mxu0
    %337 = vdwg.mxu0
    %vm338 = vcmask 31744
    %339 = vst.msk [vmem:[%s7] sm:$0xff] %vm338, %v332
    %340 = vst.msk [vmem:[%s7 + $0x8] sm:$0xff] %vm338, %v335
    // Predicated region
    $region34: #{tpu_custom_call.1} parent=1 // pred_check
      _
    $region35: #{tpu_custom_call.1} parent=1 // pred_check_branch
      %342 = sbr.rel (0) target = $region37
    $region36: #{tpu_custom_call.1} parent=1 // pred_region
      _
    $region37: #{tpu_custom_call.1} parent=1 // pred_fallthru
      _
    // Predicated region
    $region38: #{tpu_custom_call.1} parent=1 // pred_check
      _
    $region39: #{tpu_custom_call.1} parent=1 // pred_check_branch
      %344 = sbr.rel (0) target = $region41
    $region40: #{tpu_custom_call.1} parent=1 // pred_region
      _
    $region41: #{tpu_custom_call.1} parent=1 // pred_fallthru
      _
    %345 = vsyncpa [#allocation3], 1

// kernel: tpu_custom_call.1
$region0: #{tpu_custom_call.1}
  #allocation0 [shape = 'u32[]', space=smem, size = 0x4, offset = 0x4, fixed_abs, tag = 'smem constant byte address 0x4 - core index']
  #allocation1 [shape = 'u32[144,128]{1,0:T(1,128)}', space=vmem, size = 0x12000, scoped, tag = 'internal scratch']
  %s0 = inlined_call_operand.vmem [shape: bf16[16,16], index: 0, kind: input, shape index: {}]
  %s1 = inlined_call_operand.hbm [shape: bf16[16,128], index: 1, kind: input, shape index: {}]
  %s2 = inlined_call_operand.vmem [shape: f32[1,128], index: 2, kind: input, shape index: {}]
  %s3 = inlined_call_operand.vmem [shape: bf16[128,128], index: 3, kind: input, shape index: {}]
  %s4 = inlined_call_operand.vmem [shape: f32[1,128], index: 4, kind: input, shape index: {}]
  %s5 = inlined_call_operand.vmem [shape: bf16[128,4], index: 5, kind: input, shape index: {}]
  %s6 = inlined_call_operand.vmem [shape: f32[1,4], index: 6, kind: input, shape index: {}]
  %s7 = inlined_call_operand.vmem [shape: f32[16,4], index: 7, kind: output, shape index: {}]
  %s8 = sld [smem:[#allocation0]]
  $region42: #{tpu_custom_call.1} parent=0
    _
  %s10 = ssub.s32 1, %s8
  %s11 = scalar_select 0, %s10, %s8
  $region1: #{tpu_custom_call.1} parent=0
    #allocation2 [shape = 'u8[4096]{0}', space=vmem, size = 0x1000, scoped, tag = 'input window, operand 1, single buffered']
    #allocation3 [shape = 's32[1]{0}', space=sflag, size = 0x4, scoped, tag = 'scoped memory for tpu_custom_call.1']
    %12 = vsyncpa [#allocation3], 0
    // Predicated region
    $region2: #{tpu_custom_call.1} parent=1 // pred_check
      _
    $region3: #{tpu_custom_call.1} parent=1 // pred_check_branch
      %14 = sbr.rel (0) target = $region5
    $region4: #{tpu_custom_call.1} parent=1 // pred_region
      _
    $region5: #{tpu_custom_call.1} parent=1 // pred_fallthru
      _
    // Predicated region
    $region6: #{tpu_custom_call.1} parent=1 // pred_check
      _
    $region7: #{tpu_custom_call.1} parent=1 // pred_check_branch
      %16 = sbr.rel (0) target = $region9
    $region8: #{tpu_custom_call.1} parent=1 // pred_region
      %s18 = ssub.s32 128, 128
      %19 = vsyncadd [#allocation3], %s18
      %s20 = sshll.u32 [#allocation2], 4
      %s21 = int_to_ptr.vmem [resolvable:$true] %s20
      %26 = dma.hbm_to_vmem [thread:$0]  %s1, 128, %s21, [#allocation3], 64, 64, 4
    $region9: #{tpu_custom_call.1} parent=1 // pred_fallthru
      _
    // Predicated region
    $region10: #{tpu_custom_call.1} parent=1 // pred_check
      _
    $region11: #{tpu_custom_call.1} parent=1 // pred_check_branch
      %28 = sbr.rel (0) target = $region13
    $region12: #{tpu_custom_call.1} parent=1 // pred_region
      _
    $region13: #{tpu_custom_call.1} parent=1 // pred_fallthru
      _
    // Predicated region
    $region14: #{tpu_custom_call.1} parent=1 // pred_check
      _
    $region15: #{tpu_custom_call.1} parent=1 // pred_check_branch
      %30 = sbr.rel (0) target = $region17
    $region16: #{tpu_custom_call.1} parent=1 // pred_region
      _
    $region17: #{tpu_custom_call.1} parent=1 // pred_fallthru
      _
    // Predicated region
    $region18: #{tpu_custom_call.1} parent=1 // pred_check
      _
    $region19: #{tpu_custom_call.1} parent=1 // pred_check_branch
      %32 = sbr.rel (0) target = $region21
    $region20: #{tpu_custom_call.1} parent=1 // pred_region
      _
    $region21: #{tpu_custom_call.1} parent=1 // pred_fallthru
      _
    // Predicated region
    $region22: #{tpu_custom_call.1} parent=1 // pred_check
      _
    $region23: #{tpu_custom_call.1} parent=1 // pred_check_branch
      %34 = sbr.rel (0) target = $region25
    $region24: #{tpu_custom_call.1} parent=1 // pred_region
      _
    $region25: #{tpu_custom_call.1} parent=1 // pred_fallthru
      _
    // Predicated region
    $region26: #{tpu_custom_call.1} parent=1 // pred_check
      _
    $region27: #{tpu_custom_call.1} parent=1 // pred_check_branch
      %36 = sbr.rel (0) target = $region29
    $region28: #{tpu_custom_call.1} parent=1 // pred_region
      _
    $region29: #{tpu_custom_call.1} parent=1 // pred_fallthru
      _
    // Predicated region
    $region30: #{tpu_custom_call.1} parent=1 // pred_check
      _
    $region31: #{tpu_custom_call.1} parent=1 // pred_check_branch
      %38 = sbr.rel (0) target = $region33
    $region32: #{tpu_custom_call.1} parent=1 // pred_region
      %39 = dma.done [#allocation3], 128
    $region33: #{tpu_custom_call.1} parent=1 // pred_fallthru
      _
    %v41 = vld [vmem:[%s0] sm:$0xf]
    %v42 = vld [vmem:[%s0 + $0x4] sm:$0xf]
    %v43 = vld [vmem:[#allocation2] sm:$0xf]
    %v44 = vld [vmem:[#allocation2 + $0x4] sm:$0xf]
    %v45 = vld [vmem:[%s2] sm:$0x1]
    %v47 = vlaneseq
    %v48 = vshrl.u32 %v47, 7
    %v49 = vsub.s32 0, %v48
    %v50 = vrot.slane %v45, %v49
    %v54 = vunpack.c.l.b16 %v41
    %v55 = vunpack.c.l.b16 %v42
    %v56 = vpack.c.b16 %v55, %v54
    %v59 = vunpack.c.l.b16 %v43
    %v60 = vunpack.c.l.b16 %v44
    %v61 = vpack.c.b16 %v60, %v59
    %vm63 = vcmask 130048
    %v65 = vsel %vm63, %v56, 0
    %67 = vmatprep.subr.bf16.mxu0 0
    %68 = vmatpush1.bf16.msra.mxu0 %v61
    %69 = vmatprep.subr.bf16.mxu0 0
    %70 = vmatpush1.bf16.msra.mxu0 0
    %71 = vmatprep.subr.bf16.mxu0 0
    %72 = vmatpush1.bf16.msra.mxu0 0
    %73 = vmatprep.subr.bf16.mxu0 0
    %74 = vmatpush1.bf16.msra.mxu0 0
    %75 = vmatprep.subr.bf16.mxu0 0
    %76 = vmatpush1.bf16.msra.mxu0 0
    %77 = vmatprep.subr.bf16.mxu0 0
    %78 = vmatpush1.bf16.msra.mxu0 0
    %79 = vmatprep.subr.bf16.mxu0 0
    %80 = vmatpush1.bf16.msra.mxu0 0
    %81 = vmatprep.subr.bf16.mxu0 0
    %82 = vmatpush1.bf16.msra.mxu0 0
    %83 = vmatprep.subr.bf16.mxu0 0
    %84 = vmatpush1.bf16.msra.mxu0 0
    %85 = vmatprep.subr.bf16.mxu0 0
    %86 = vmatpush1.bf16.msra.mxu0 0
    %87 = vmatprep.subr.bf16.mxu0 0
    %88 = vmatpush1.bf16.msra.mxu0 0
    %89 = vmatprep.subr.bf16.mxu0 0
    %90 = vmatpush1.bf16.msra.mxu0 0
    %91 = vmatprep.subr.bf16.mxu0 0
    %92 = vmatpush1.bf16.msra.mxu0 0
    %93 = vmatprep.subr.bf16.mxu0 0
    %94 = vmatpush1.bf16.msra.mxu0 0
    %95 = vmatprep.subr.bf16.mxu0 0
    %96 = vmatpush1.bf16.msra.mxu0 0
    %97 = vmatprep.subr.bf16.mxu0 0
    %98 = vmatpush1.bf16.msra.mxu0 0
    %99 = vmatprep.mubr.bf16.mxu0 0
    %100 = vmatmul.mubr.bf16.gmra.mrb[0].mxu0 %v65
    %v101 = vpop.f32.mrb[0].mxu0
    %v102 = vadd.f32 %v50, %v101
    %v103 = vpop.f32.mrb[0].mxu0
    %v104 = vpop.f32.mrb[0].mxu0
    %v105 = vadd.f32 %v50, %v104
    %v106 = vpop.f32.mrb[0].mxu0
    %107 = vdwg.mxu0
    %v108 = vmax.f32 %v102, 0.0
    %v109 = vmax.f32 %v105, 0.0
    %v110 = vld [vmem:[%s3] sm:$0xf]
    %v111 = vld [vmem:[%s3 + $0x4] sm:$0xf]
    %v112 = vld [vmem:[%s3 + $0x8] sm:$0xf]
    %v113 = vld [vmem:[%s3 + $0xc] sm:$0xf]
    %v114 = vld [vmem:[%s3 + $0x10] sm:$0xf]
    %v115 = vld [vmem:[%s3 + $0x14] sm:$0xf]
    %v116 = vld [vmem:[%s3 + $0x18] sm:$0xf]
    %v117 = vld [vmem:[%s3 + $0x1c] sm:$0xf]
    %v118 = vld [vmem:[%s3 + $0x20] sm:$0xf]
    %v119 = vld [vmem:[%s3 + $0x24] sm:$0xf]
    %v120 = vld [vmem:[%s3 + $0x28] sm:$0xf]
    %v121 = vld [vmem:[%s3 + $0x2c] sm:$0xf]
    %v122 = vld [vmem:[%s3 + $0x30] sm:$0xf]
    %v123 = vld [vmem:[%s3 + $0x34] sm:$0xf]
    %v124 = vld [vmem:[%s3 + $0x38] sm:$0xf]
    %v125 = vld [vmem:[%s3 + $0x3c] sm:$0xf]
    %v126 = vld [vmem:[%s4] sm:$0x1]
    %v127 = vpack.c.bf16 %v109, %v108
    %v129 = vlaneseq
    %v130 = vshrl.u32 %v129, 7
    %v131 = vsub.s32 0, %v130
    %v132 = vrot.slane %v126, %v131
    %v150 = vunpack.c.l.b16 %v110
    %v151 = vunpack.c.l.b16 %v111
    %v152 = vunpack.c.l.b16 %v112
    %v153 = vunpack.c.l.b16 %v113
    %v154 = vunpack.c.l.b16 %v114
    %v155 = vunpack.c.l.b16 %v115
    %v156 = vunpack.c.l.b16 %v116
    %v157 = vunpack.c.l.b16 %v117
    %v158 = vunpack.c.l.b16 %v118
    %v159 = vunpack.c.l.b16 %v119
    %v160 = vunpack.c.l.b16 %v120
    %v161 = vunpack.c.l.b16 %v121
    %v162 = vunpack.c.l.b16 %v122
    %v163 = vunpack.c.l.b16 %v123
    %v164 = vunpack.c.l.b16 %v124
    %v165 = vunpack.c.l.b16 %v125
    %v166 = vpack.c.b16 %v151, %v150
    %v167 = vpack.c.b16 %v153, %v152
    %v168 = vpack.c.b16 %v155, %v154
    %v169 = vpack.c.b16 %v157, %v156
    %v170 = vpack.c.b16 %v159, %v158
    %v171 = vpack.c.b16 %v161, %v160
    %v172 = vpack.c.b16 %v163, %v162
    %v173 = vpack.c.b16 %v165, %v164
    %182 = vmatprep.subr.bf16.mxu0 0
    %183 = vmatpush1.bf16.msra.mxu0 %v166
    %184 = vmatprep.subr.bf16.mxu0 0
    %185 = vmatpush1.bf16.msra.mxu0 %v167
    %186 = vmatprep.subr.bf16.mxu0 0
    %187 = vmatpush1.bf16.msra.mxu0 %v168
    %188 = vmatprep.subr.bf16.mxu0 0
    %189 = vmatpush1.bf16.msra.mxu0 %v169
    %190 = vmatprep.subr.bf16.mxu0 0
    %191 = vmatpush1.bf16.msra.mxu0 %v170
    %192 = vmatprep.subr.bf16.mxu0 0
    %193 = vmatpush1.bf16.msra.mxu0 %v171
    %194 = vmatprep.subr.bf16.mxu0 0
    %195 = vmatpush1.bf16.msra.mxu0 %v172
    %196 = vmatprep.subr.bf16.mxu0 0
    %197 = vmatpush1.bf16.msra.mxu0 %v173
    %198 = vmatprep.subr.bf16.mxu0 0
    %199 = vmatpush1.bf16.msra.mxu0 0
    %200 = vmatprep.subr.bf16.mxu0 0
    %201 = vmatpush1.bf16.msra.mxu0 0
    %202 = vmatprep.subr.bf16.mxu0 0
    %203 = vmatpush1.bf16.msra.mxu0 0
    %204 = vmatprep.subr.bf16.mxu0 0
    %205 = vmatpush1.bf16.msra.mxu0 0
    %206 = vmatprep.subr.bf16.mxu0 0
    %207 = vmatpush1.bf16.msra.mxu0 0
    %208 = vmatprep.subr.bf16.mxu0 0
    %209 = vmatpush1.bf16.msra.mxu0 0
    %210 = vmatprep.subr.bf16.mxu0 0
    %211 = vmatpush1.bf16.msra.mxu0 0
    %212 = vmatprep.subr.bf16.mxu0 0
    %213 = vmatpush1.bf16.msra.mxu0 0
    %214 = vmatprep.mubr.bf16.mxu0 0
    %215 = vmatmul.mubr.bf16.gmra.mrb[0].mxu0 %v127
    %v216 = vpop.f32.mrb[0].mxu0
    %v217 = vadd.f32 %v132, %v216
    %v218 = vpop.f32.mrb[0].mxu0
    %v219 = vpop.f32.mrb[0].mxu0
    %v220 = vadd.f32 %v132, %v219
    %v221 = vpop.f32.mrb[0].mxu0
    %222 = vdwg.mxu0
    %v223 = vmax.f32 %v217, 0.0
    %v224 = vmax.f32 %v220, 0.0
    %v225 = vld [vmem:[%s5] sm:$0xf]
    %v226 = vld [vmem:[%s5 + $0x4] sm:$0xf]
    %v227 = vld [vmem:[%s5 + $0x8] sm:$0xf]
    %v228 = vld [vmem:[%s5 + $0xc] sm:$0xf]
    %v229 = vld [vmem:[%s5 + $0x10] sm:$0xf]
    %v230 = vld [vmem:[%s5 + $0x14] sm:$0xf]
    %v231 = vld [vmem:[%s5 + $0x18] sm:$0xf]
    %v232 = vld [vmem:[%s5 + $0x1c] sm:$0xf]
    %v233 = vld [vmem:[%s5 + $0x20] sm:$0xf]
    %v234 = vld [vmem:[%s5 + $0x24] sm:$0xf]
    %v235 = vld [vmem:[%s5 + $0x28] sm:$0xf]
    %v236 = vld [vmem:[%s5 + $0x2c] sm:$0xf]
    %v237 = vld [vmem:[%s5 + $0x30] sm:$0xf]
    %v238 = vld [vmem:[%s5 + $0x34] sm:$0xf]
    %v239 = vld [vmem:[%s5 + $0x38] sm:$0xf]
    %v240 = vld [vmem:[%s5 + $0x3c] sm:$0xf]
    %v241 = vld [vmem:[%s6] sm:$0x1]
    %v242 = vpack.c.bf16 %v224, %v223
    %v244 = vlaneseq
    %v245 = vshrl.u32 %v244, 7
    %v246 = vsub.s32 0, %v245
    %v247 = vrot.slane %v241, %v246
    %v265 = vunpack.c.l.b16 %v225
    %v266 = vunpack.c.l.b16 %v226
    %v267 = vunpack.c.l.b16 %v227
    %v268 = vunpack.c.l.b16 %v228
    %v269 = vunpack.c.l.b16 %v229
    %v270 = vunpack.c.l.b16 %v230
    %v271 = vunpack.c.l.b16 %v231
    %v272 = vunpack.c.l.b16 %v232
    %v273 = vunpack.c.l.b16 %v233
    %v274 = vunpack.c.l.b16 %v234
    %v275 = vunpack.c.l.b16 %v235
    %v276 = vunpack.c.l.b16 %v236
    %v277 = vunpack.c.l.b16 %v237
    %v278 = vunpack.c.l.b16 %v238
    %v279 = vunpack.c.l.b16 %v239
    %v280 = vunpack.c.l.b16 %v240
    %v281 = vpack.c.b16 %v266, %v265
    %v282 = vpack.c.b16 %v268, %v267
    %v283 = vpack.c.b16 %v270, %v269
    %v284 = vpack.c.b16 %v272, %v271
    %v285 = vpack.c.b16 %v274, %v273
    %v286 = vpack.c.b16 %v276, %v275
    %v287 = vpack.c.b16 %v278, %v277
    %v288 = vpack.c.b16 %v280, %v279
    %297 = vmatprep.subr.bf16.mxu0 0
    %298 = vmatpush1.bf16.msra.mxu0 %v281
    %299 = vmatprep.subr.bf16.mxu0 0
    %300 = vmatpush1.bf16.msra.mxu0 %v282
    %301 = vmatprep.subr.bf16.mxu0 0
    %302 = vmatpush1.bf16.msra.mxu0 %v283
    %303 = vmatprep.subr.bf16.mxu0 0
    %304 = vmatpush1.bf16.msra.mxu0 %v284
    %305 = vmatprep.subr.bf16.mxu0 0
    %306 = vmatpush1.bf16.msra.mxu0 %v285
    %307 = vmatprep.subr.bf16.mxu0 0
    %308 = vmatpush1.bf16.msra.mxu0 %v286
    %309 = vmatprep.subr.bf16.mxu0 0
    %310 = vmatpush1.bf16.msra.mxu0 %v287
    %311 = vmatprep.subr.bf16.mxu0 0
    %312 = vmatpush1.bf16.msra.mxu0 %v288
    %313 = vmatprep.subr.bf16.mxu0 0
    %314 = vmatpush1.bf16.msra.mxu0 0
    %315 = vmatprep.subr.bf16.mxu0 0
    %316 = vmatpush1.bf16.msra.mxu0 0
    %317 = vmatprep.subr.bf16.mxu0 0
    %318 = vmatpush1.bf16.msra.mxu0 0
    %319 = vmatprep.subr.bf16.mxu0 0
    %320 = vmatpush1.bf16.msra.mxu0 0
    %321 = vmatprep.subr.bf16.mxu0 0
    %322 = vmatpush1.bf16.msra.mxu0 0
    %323 = vmatprep.subr.bf16.mxu0 0
    %324 = vmatpush1.bf16.msra.mxu0 0
    %325 = vmatprep.subr.bf16.mxu0 0
    %326 = vmatpush1.bf16.msra.mxu0 0
    %327 = vmatprep.subr.bf16.mxu0 0
    %328 = vmatpush1.bf16.msra.mxu0 0
    %329 = vmatprep.mubr.bf16.mxu0 0
    %330 = vmatmul.mubr.bf16.gmra.mrb[0].mxu0 %v242
    %v331 = vpop.f32.mrb[0].mxu0
    %v332 = vadd.f32 %v247, %v331
    %v333 = vpop.f32.mrb[0].mxu0
    %v334 = vpop.f32.mrb[0].mxu0
    %v335 = vadd.f32 %v247, %v334
    %v336 = vpop.f32.mrb[0].mxu0
    %337 = vdwg.mxu0
    %vm338 = vcmask 31744
    %339 = vst.msk [vmem:[%s7] sm:$0xff] %vm338, %v332
    %340 = vst.msk [vmem:[%s7 + $0x8] sm:$0xff] %vm338, %v335
    // Predicated region
    $region34: #{tpu_custom_call.1} parent=1 // pred_check
      _
    $region35: #{tpu_custom_call.1} parent=1 // pred_check_branch
      %342 = sbr.rel (0) target = $region37
    $region36: #{tpu_custom_call.1} parent=1 // pred_region
      _
    $region37: #{tpu_custom_call.1} parent=1 // pred_fallthru
      _
    // Predicated region
    $region38: #{tpu_custom_call.1} parent=1 // pred_check
      _
    $region39: #{tpu_custom_call.1} parent=1 // pred_check_branch
      %344 = sbr.rel (0) target = $region41
    $region40: #{tpu_custom_call.1} parent=1 // pred_region
      _
    $region41: #{tpu_custom_call.1} parent=1 // pred_fallthru
      _
    %345 = vsyncpa [#allocation3], 1

</llo_original>
